<compile_context>
chip_gen: v7x
topology: tpu7x:2x2x1
jax: 0.10.0
libtpu: 0.0.40
codegen_flags: <defaults>
</compile_context>

<pallas_src>
import jax
import jax.numpy as jnp
from jax.experimental import pallas as pl
from jax.experimental.pallas import tpu as pltpu


_MiB = 1024 * 1024
# Double-buffered projection-matrix window budget (the dominant VMEM user).
_P_WINDOW_BUDGET = 24 * _MiB
# Hard cap for the scoped-VMEM limit: leaves headroom even on v7x (64 MiB phys).
_VMEM_LIMIT_CAP = 48 * _MiB


def _round_up(x, m):
    return (x + m - 1) // m * m


def _plan_tiles(k, n, elem_bytes, *, tile_k, max_tile_n):
    """Pick lane-aligned (tk, tn) and padded (kp, np_) for a (k, n) projection."""
    # Full-N tile when proj_dim is small -> contiguous P DMAs.
    tn = min(_round_up(n, 128), _round_up(max_tile_n, 128))
    np_ = _round_up(n, tn)
    tk = min(_round_up(k, 128), _round_up(tile_k, 128))
    # Clamp tk so the double-buffered P window fits its VMEM budget.
    while tk > 128 and 2 * tk * tn * elem_bytes > _P_WINDOW_BUDGET:
        tk = max(128, _round_up(tk // 2, 128))
    kp = _round_up(k, tk)
    return tk, tn, kp, np_


def _proj_matmul_kernel(x_ref, p_ref, o_ref):
    """One (n, k) grid step of  out[:, n-tile] += x[:, k-tile] @ P[k-tile, n-tile].

    NOTE: correctness relies on the K (reduction) axis being the LAST grid axis
    (program_id(1)); the f32 output block is resident across it and accumulated
    in place.  Do not reorder the grid axes.
    """
    @pl.when(pl.program_id(1) == 0)
    def _init():
        o_ref[...] = jnp.zeros_like(o_ref)

    # Narrow-dtype tiles straight into the MXU, f32 accumulation into o_ref.
    o_ref[...] += jnp.dot(x_ref[...], p_ref[...],
                          preferred_element_type=jnp.float32)


def project_features(feats, proj_padded, plan):
    """(BS, F) @ (F, proj_dim) with the F axis streamed through VMEM.

    `proj_padded` must already be cast to feats.dtype and zero-padded to
    (kp, np_) as described by `plan` (done once at projection creation).
    """
    bs, k = feats.shape
    tk, tn, kp, np_ = plan
    assert proj_padded.shape == (kp, np_)
    assert proj_padded.dtype == feats.dtype

    if kp != k:
        # Zero-pad the (small, per-call) feature rows; P rows are zero there
        # too, so the result is unchanged.
        feats = jnp.pad(feats, ((0, 0), (0, kp - k)))

    grid = (np_ // tn, kp // tk)  # (parallel N, innermost arbitrary K-reduction)

    itemsize = jnp.dtype(feats.dtype).itemsize
    out_itemsize = jnp.dtype(jnp.float32).itemsize
    cost = pl.CostEstimate(
        flops=2 * bs * kp * np_,
        transcendentals=0,
        bytes_accessed=(bs * kp * grid[0] + kp * np_) * itemsize
        + bs * np_ * out_itemsize,
    )

    # Double-buffered windows actually used by the pipeline + headroom.
    vmem_needed = (2 * (bs * tk + tk * tn) * itemsize
                   + 2 * bs * tn * out_itemsize
                   + 4 * _MiB)
    vmem_limit = int(min(_VMEM_LIMIT_CAP, max(32 * _MiB, vmem_needed)))

    out = pl.pallas_call(
        _proj_matmul_kernel,
        out_shape=jax.ShapeDtypeStruct((bs, np_), jnp.float32),
        grid_spec=pltpu.PrefetchScalarGridSpec(
            num_scalar_prefetch=0,
            grid=grid,
            in_specs=[
                pl.BlockSpec((bs, tk), lambda ni, ki: (0, ki)),
                pl.BlockSpec((tk, tn), lambda ni, ki: (ki, ni)),
            ],
            out_specs=pl.BlockSpec((bs, tn), lambda ni, ki: (0, ni)),
        ),
        compiler_params=pltpu.CompilerParams(
            dimension_semantics=("parallel", "arbitrary"),
            vmem_limit_bytes=vmem_limit,
        ),
        cost_estimate=cost,
    )(feats, proj_padded)

    n = min(np_, out.shape[1])
    return out[:, :np_] if np_ == out.shape[1] else out
    # (np_ always equals out.shape[1]; caller slices off proj_dim padding.)


class ProjectedLPIPSFeats:
    """JAX/Pallas port of ProjectedLPIPSFeats (projection path)."""

    def __init__(self, proj_dim=None, key=None, *, tile_k=16384, max_tile_n=512,
                 small_k_threshold=512):
        self.proj_dim = proj_dim
        self.projections = {}      # mirrors nn.ModuleDict: dim -> f32 normalized P
        self._prepared = {}        # (dim, dtype) -> (padded/cast P, tile plan)
        self._key = key if key is not None else jax.random.PRNGKey(0)
        self._tile_k = tile_k
        self._max_tile_n = max_tile_n
        self._small_k_threshold = small_k_threshold

    # -- projection creation / caching ------------------------------------
    def _get_projection(self, dim):
        if dim not in self.projections:
            self._key, sub = jax.random.split(self._key)
            p = jax.random.normal(sub, (dim, self.proj_dim), dtype=jnp.float32)
            # F.normalize(p=2, dim=1): unit L2 norm per row.
            p = p / jnp.sqrt(jnp.sum(p * p, axis=1, keepdims=True) + 1e-24)
            self.projections[dim] = p
        return self.projections[dim]

    def _get_prepared_projection(self, dim, dtype):
        """Projection cast to the wire dtype and zero-padded to the tile grid,
        computed once and cached (avoids per-forward full-size HBM copies)."""
        key = (dim, jnp.dtype(dtype).name)
        if key not in self._prepared:
            p = self._get_projection(dim)
            n = self.proj_dim
            plan = _plan_tiles(dim, n, jnp.dtype(dtype).itemsize,
                               tile_k=self._tile_k, max_tile_n=self._max_tile_n)
            tk, tn, kp, np_ = plan
            p = p.astype(dtype)
            if kp != dim or np_ != n:
                p = jnp.pad(p, ((0, kp - dim), (0, np_ - n)))
            self._prepared[key] = (p, plan)
        return self._prepared[key]

    def reset_projections(self):
        self.projections = {}
        self._prepared = {}

    # -- forward -----------------------------------------------------------
    def project_tensor(self, t):
        t = t if isinstance(t, list) else [t]
        results = []
        for t_ in t:
            dim = t_.shape[-1]
            if dim <= self._small_k_threshold:
                # Tiny level: DMA-bound op, a pallas_call launch is pure
                # overhead -> let XLA handle it (same numerics: narrow-dtype
                # operands, f32 accumulation).
                p = self._get_projection(dim).astype(t_.dtype)
                results.append(jnp.dot(t_, p, preferred_element_type=jnp.float32))
            else:
                p, plan = self._get_prepared_projection(dim, t_.dtype)
                out = project_features(t_, p, plan)
                results.append(out[:, :self.proj_dim])
        return results

    def forward(self, lpips_feats):
        # TODO(synk): LPIPSFeats (pretrained VGG16 backbone + learned per-layer
        # lin heads) is an external module whose weights are not provided in the
        # spec; callers supply its per-level (BS, F_i) feature outputs here.
        fx = lpips_feats
        if self.proj_dim is not None:
            fx = self.project_tensor(fx)
        return fx


if __name__ == "__main__":
    key = jax.random.PRNGKey(0)
    x = jax.random.normal(key, (2, 4, 16, 16), dtype=jnp.float32)  # BSxCxHxW

    # Stand-in for the external LPIPSFeats backbone: multi-scale pooled +
    # flattened activations, one (BS, F_i) tensor per "level" (F_i decreasing),
    # emitted in bf16 as an autocast backbone would.
    def standin_lpips_feats(img):
        b, c, h, w = img.shape
        feats = []
        for f in (1, 2, 4):
            pooled = img.reshape(b, c, h // f, f, w // f, f).mean(axis=(3, 5))
            feats.append(pooled.reshape(b, -1).astype(jnp.bfloat16))
        return feats

    feats = standin_lpips_feats(x)             # feature dims: 1024, 256, 64

    proj_dim = 256
    # Small tile_k / threshold here so the demo exercises multiple K (reduction)
    # grid steps on the 1024-dim level and the small-level fallback on the
    # 64-dim level; production defaults are tile_k=16384, small_k_threshold=512.
    module = ProjectedLPIPSFeats(proj_dim=proj_dim, key=jax.random.PRNGKey(1),
                                 tile_k=256, small_k_threshold=128)
    out = module.forward(feats)
    out = [jax.block_until_ready(o) for o in out]

    # Pure-JAX reference of the projection path (same bf16 wire values: both
    # the kernel and the fallback consume bf16 operands with f32 accumulation).
    for f_, o_ in zip(feats, out):
        p_bf16 = module.projections[f_.shape[-1]].astype(jnp.bfloat16)
        ref = jnp.matmul(f_.astype(jnp.float32), p_bf16.astype(jnp.float32),
                         precision=jax.lax.Precision.HIGHEST)
        assert o_.shape == (f_.shape[0], proj_dim)
        assert jnp.allclose(o_.astype(jnp.float32), ref, rtol=2e-3, atol=2e-3), \
            f"mismatch at feature dim {f_.shape[-1]}"

    # proj_dim=None path: features must be returned unmodified.
    passthrough = ProjectedLPIPSFeats(proj_dim=None).forward(feats)
    assert all(a is b for a, b in zip(passthrough, feats))

    print("KERNEL_OK")
</pallas_src>

<mosaic_0001>
module attributes {stable_mosaic.version = 11 : i64} {
  func.func @_proj_matmul_kernel(%arg0: i32, %arg1: i32, %arg2: memref<2x256xbf16, #tpu.memory_space<vmem>>, %arg3: memref<256x256xbf16, #tpu.memory_space<vmem>>, %arg4: memref<2x256xf32, #tpu.memory_space<vmem>>) attributes {dimension_semantics = [#tpu.dimension_semantics<parallel>, #tpu.dimension_semantics<arbitrary>], iteration_bounds = array<i64: 1, 4>, scalar_prefetch = 0 : i64, scratch_operands = 0 : i64, tpu.core_type = #tpu.core_type<tc>, window_params = [{transform_indices = @transform_0, window_bounds = array<i64: 2, 256>}, {transform_indices = @transform_1, window_bounds = array<i64: 256, 256>}, {transform_indices = @transform_2, window_bounds = array<i64: 2, 256>}]} {
    %c0_i32 = arith.constant 0 : i32
    %0 = arith.cmpi eq, %arg1, %c0_i32 : i32
    %1 = arith.extui %0 : i1 to i32
    %c0_i32_0 = arith.constant 0 : i32
    %2 = arith.cmpi ne, %1, %c0_i32_0 : i32
    scf.if %2 {
      %cst_8 = arith.constant 0.000000e+00 : f32
      %9 = vector.broadcast %cst_8 : f32 to vector<2x256xf32>
      %c0_9 = arith.constant 0 : index
      %c0_10 = arith.constant 0 : index
      %10 = vector.load %arg4[%c0_9, %c0_10] : memref<2x256xf32, #tpu.memory_space<vmem>>, vector<2x256xf32>
      tpu.vector_store %arg4[%c0_9, %c0_10], %9 {strides = array<i32>} : memref<2x256xf32, #tpu.memory_space<vmem>>, vector<2x256xf32>,
    } else {
    }
    %c0 = arith.constant 0 : index
    %c0_1 = arith.constant 0 : index
    %3 = vector.load %arg4[%c0, %c0_1] : memref<2x256xf32, #tpu.memory_space<vmem>>, vector<2x256xf32>
    %c0_2 = arith.constant 0 : index
    %c0_3 = arith.constant 0 : index
    %4 = vector.load %arg2[%c0_2, %c0_3] : memref<2x256xbf16, #tpu.memory_space<vmem>>, vector<2x256xbf16>
    %c0_4 = arith.constant 0 : index
    %c0_5 = arith.constant 0 : index
    %5 = vector.load %arg3[%c0_4, %c0_5] : memref<256x256xbf16, #tpu.memory_space<vmem>>, vector<256x256xbf16>
    %cst = arith.constant dense<0.000000e+00> : vector<2x256xf32>
    %6 = tpu.matmul %4, %5, %cst {dimension_numbers = #tpu.dot_dimension_numbers<[1], [0], [0], [1], [0, 0, 1, 1], [], []>} : vector<2x256xbf16>, vector<256x256xbf16>, vector<2x256xf32> -> vector<2x256xf32>
    %7 = arith.addf %3, %6 : vector<2x256xf32>
    %c0_6 = arith.constant 0 : index
    %c0_7 = arith.constant 0 : index
    %8 = vector.load %arg4[%c0_6, %c0_7] : memref<2x256xf32, #tpu.memory_space<vmem>>, vector<2x256xf32>
    tpu.vector_store %arg4[%c0_6, %c0_7], %7 {strides = array<i32>} : memref<2x256xf32, #tpu.memory_space<vmem>>, vector<2x256xf32>,
    return
  }
  func.func @transform_0(%arg0: i32, %arg1: i32) -> (i32, i32) {
    %c0_i32 = arith.constant 0 : i32
    %c0_i32_0 = arith.constant 0 : i32
    return %c0_i32, %arg1 : i32, i32
  }
  func.func @transform_1(%arg0: i32, %arg1: i32) -> (i32, i32) {
    %c0_i32 = arith.constant 0 : i32
    return %arg1, %arg0 : i32, i32
  }
  func.func @transform_2(%arg0: i32, %arg1: i32) -> (i32, i32) {
    %c0_i32 = arith.constant 0 : i32
    %c0_i32_0 = arith.constant 0 : i32
    return %c0_i32, %arg0 : i32, i32
  }
}

</mosaic_0001>

<llo_original>
// kernel: tpu_custom_call.1
$region0: #{tpu_custom_call.1}
  #allocation0 [shape = 'u32[]', space=smem, size = 0x4, offset = 0x4, fixed_abs, tag = 'smem constant byte address 0x4 - core index']
  #allocation1 [shape = 'u32[144,128]{1,0:T(1,128)}', space=vmem, size = 0x12000, scoped, tag = 'internal scratch']
  %s0 = inlined_call_operand.hbm [shape: bf16[2,1024], index: 0, kind: input, shape index: {}]
  %s1 = inlined_call_operand.hbm [shape: bf16[1024,256], index: 1, kind: input, shape index: {}]
  %s2 = inlined_call_operand.hbm [shape: f32[2,256], index: 2, kind: output, shape index: {}]
  %s3 = sld [smem:[#allocation0]]
  $region53: #{tpu_custom_call.1} parent=0
    _
  %s5 = ssub.s32 1, %s3
  %s6 = scalar_select 0, %s5, %s3
  $region1: #{tpu_custom_call.1} parent=0
    #allocation2 [shape = 'u8[2048]{0}', space=vmem, size = 0x800, scoped, tag = 'input window, operand 0']
    #allocation3 [shape = 's32[2]{0}', space=sflag, size = 0x8, scoped, tag = 'scoped memory for tpu_custom_call.1']
    #allocation4 [shape = 's32[2]{0}', space=sflag, size = 0x8, scoped, tag = 'scoped memory for tpu_custom_call.1']
    #allocation5 [shape = 'u8[262144]{0}', space=vmem, size = 0x40000, scoped, tag = 'input window, operand 1']
    #allocation6 [shape = 's32[2]{0}', space=sflag, size = 0x8, scoped, tag = 'scoped memory for tpu_custom_call.1']
    #allocation7 [shape = 'u8[2048]{0}', space=vmem, size = 0x800, scoped, tag = 'output window, operand 0, single buffered']
    %7 = vsyncpa [#allocation3], 0
    %s8 = scalar_lea.sflag [#allocation3], 1
    %9 = vsyncpa %s8, 0
    %10 = vsyncpa [#allocation6], 0
    %s11 = scalar_lea.sflag [#allocation6], 1
    %12 = vsyncpa %s11, 0
    %13 = vsyncpa [#allocation4], 0
    loop: start=0, step=1, limit=6
    $region2: #{tpu_custom_call.1} parent=1 // loop_pre_header
      _
    $region3: #{tpu_custom_call.1} parent=1 // loop_header
      %s15 = sphi 0, %s19
      %p16 = scmp.ge.s32.totalorder %s15, 6
      %s22 = sphi 0, %s34
      %s23 = sphi 0, %s30
      %s24 = sphi 0, %s22
      %s25 = sphi 0, %s23
      %s26 = sphi 0, %s24
      %s27 = sphi 0, %s25
      %s37 = sphi 0, %s39
      %s40 = sphi 0, %s37
      %s41 = sphi 0, %s40
      %s57 = sphi 0, %s41
      %s65 = sphi 0, %s67
      %s68 = sphi 0, %s65
      %s69 = sphi 0, %s68
      %s85 = sphi 0, %s69
      %s91 = sphi 0, %s93
      %s94 = sphi 0, %s91
      %s95 = sphi 0, %s94
      %s111 = sphi 0, %s95
    $region4: #{tpu_custom_call.1} parent=1 // loop_header_branch
      %18 = sbr.rel (%p16) target = $region8
    $region5: #{tpu_custom_call.1} parent=1 // loop_body
      %s20 = ssub.s32 %s15, 1
      %s21 = ssub.s32 %s15, 2
      %s28 = sadd.s32 1, %s23
      %p29 = scmp.ge.s32.totalorder %s28, 4
      %s30 = scalar_select %p29, 0, %s28
      %s31 = sadd.s32 1, %s22
      %s32 = scalar_select %p29, %s31, %s22
      %p33 = scmp.ge.s32.totalorder %s32, 1
      %s34 = scalar_select %p33, 0, %s32
      %s35 = ssub.s32 %s23, %s30
      %p36 = scmp.eq.s32.totalorder %s35, 0
      %s38 = sadd.s32 %s37, 1
      %s39 = scalar_select %p36, %s37, %s38
      %p42 = pneg %p36
      %p43 = scmp.eq.s32.totalorder %s15, 3
      %p44 = por %p42, %p43
      %p45 = scmp.ne.s32.totalorder %s37, %s40
      %p46 = scmp.eq.s32.totalorder %s15, 0
      %p47 = por %p45, %p46
      %p48 = scmp.ne.s32.totalorder %s37, %s40
      %p49 = scmp.eq.s32.totalorder %s20, 3
      %p50 = por %p48, %p49
      %p51 = scmp.ne.s32.totalorder %s40, %s41
      %p52 = scmp.eq.s32.totalorder %s20, 0
      %p53 = por %p51, %p52
      %p54 = scmp.ne.s32.totalorder %s40, %s41
      %p55 = scmp.eq.s32.totalorder %s21, 3
      %p56 = por %p54, %p55
      %p58 = scmp.ne.s32.totalorder %s41, %s57
      %p59 = scmp.eq.s32.totalorder %s21, 0
      %p60 = por %p58, %p59
      %s61 = ssub.s32 %s23, %s30
      %s62 = ssub.s32 %s22, %s34
      %s63 = sor.u32 %s61, %s62
      %p64 = scmp.eq.s32.totalorder %s63, 0
      %s66 = sadd.s32 %s65, 1
      %s67 = scalar_select %p64, %s65, %s66
      %p70 = pneg %p64
      %p71 = scmp.eq.s32.totalorder %s15, 3
      %p72 = por %p70, %p71
      %p73 = scmp.ne.s32.totalorder %s65, %s68
      %p74 = scmp.eq.s32.totalorder %s15, 0
      %p75 = por %p73, %p74
      %p76 = scmp.ne.s32.totalorder %s65, %s68
      %p77 = scmp.eq.s32.totalorder %s20, 3
      %p78 = por %p76, %p77
      %p79 = scmp.ne.s32.totalorder %s68, %s69
      %p80 = scmp.eq.s32.totalorder %s20, 0
      %p81 = por %p79, %p80
      %p82 = scmp.ne.s32.totalorder %s68, %s69
      %p83 = scmp.eq.s32.totalorder %s21, 3
      %p84 = por %p82, %p83
      %p86 = scmp.ne.s32.totalorder %s69, %s85
      %p87 = scmp.eq.s32.totalorder %s21, 0
      %p88 = por %p86, %p87
      %s89 = ssub.s32 %s22, %s34
      %p90 = scmp.eq.s32.totalorder %s89, 0
      %s92 = sadd.s32 %s91, 1
      %s93 = scalar_select %p90, %s91, %s92
      %p96 = pneg %p90
      %p97 = scmp.eq.s32.totalorder %s15, 3
      %p98 = por %p96, %p97
      %p99 = scmp.ne.s32.totalorder %s91, %s94
      %p100 = scmp.eq.s32.totalorder %s15, 0
      %p101 = por %p99, %p100
      %p102 = scmp.ne.s32.totalorder %s91, %s94
      %p103 = scmp.eq.s32.totalorder %s20, 3
      %p104 = por %p102, %p103
      %p105 = scmp.ne.s32.totalorder %s94, %s95
      %p106 = scmp.eq.s32.totalorder %s20, 0
      %p107 = por %p105, %p106
      %p108 = scmp.ne.s32.totalorder %s94, %s95
      %p109 = scmp.eq.s32.totalorder %s21, 3
      %p110 = por %p108, %p109
      %p112 = scmp.ne.s32.totalorder %s95, %s111
      %p113 = scmp.eq.s32.totalorder %s21, 0
      %p114 = por %p112, %p113
      %p115 = scmp.le.s32.totalorder 1, %s15
      %p116 = scmp.lt.s32.totalorder %s15, 5
      %p117 = pnand %p115, %p116
      %p118 = pneg %p117
      // Predicated region
      $region9: #{tpu_custom_call.1} parent=5 // pred_check
        _
      $region10: #{tpu_custom_call.1} parent=5 // pred_check_branch
        %120 = sbr.rel (%p117) target = $region12
      $region11: #{tpu_custom_call.1} parent=5 // pred_region
        %s121 = ssub.s32 %s15, 1
      $region12: #{tpu_custom_call.1} parent=5 // pred_fallthru
        _
      %p122 = scmp.lt.s32.totalorder %s15, 4
      // Predicated region
      $region13: #{tpu_custom_call.1} parent=5 // pred_check
        %p123 = pneg %p122
      $region14: #{tpu_custom_call.1} parent=5 // pred_check_branch
        %125 = sbr.rel (%p123) target = $region16
      $region15: #{tpu_custom_call.1} parent=5 // pred_region
        // Predicated region
        $region17: #{tpu_custom_call.1} parent=15 // pred_check
          %p126 = pneg %p47
        $region18: #{tpu_custom_call.1} parent=15 // pred_check_branch
          %128 = sbr.rel (%p126) target = $region20
        $region19: #{tpu_custom_call.1} parent=15 // pred_region
          %s129 = sand.u32 %s37, 1
          %s130 = scalar_lea.sflag [#allocation3], %s129
          %s131 = sand.u32 %s37, 1
          %s132 = smul.addr %s131, 2
          %s133 = scalar_lea.vmem [#allocation2], %s132
          %s134 = smul.u32 2, %s23
          %s136 = ssub.s32 32, 32
          %137 = vsyncadd %s130, %s136
          %s138 = smul.addr %s134, 16
          %s139 = scalar_lea.hbm %s0, %s138
          %s141 = sshll.u32 %s133, 4
          %s142 = int_to_ptr.vmem [resolvable:$true] %s141
          %144 = dma.hbm_to_vmem [thread:$0]  %s139, 32, %s142, %s130
        $region20: #{tpu_custom_call.1} parent=15 // pred_fallthru
          _
        // Predicated region
        $region21: #{tpu_custom_call.1} parent=15 // pred_check
          %p145 = pneg %p75
        $region22: #{tpu_custom_call.1} parent=15 // pred_check_branch
          %147 = sbr.rel (%p145) target = $region24
        $region23: #{tpu_custom_call.1} parent=15 // pred_region
          %s148 = sand.u32 %s65, 1
          %s149 = scalar_lea.sflag [#allocation6], %s148
          %s150 = sand.u32 %s65, 1
          %s151 = smul.addr %s150, 256
          %s152 = scalar_lea.vmem [#allocation5], %s151
          %s153 = smul.u32 32, %s23
          %s154 = smul.u32 2, %s22
          %s156 = ssub.s32 4096, 4096
          %157 = vsyncadd %s149, %s156
          %s158 = smul.addr %s153, 2
          %s159 = sadd.s32 %s154, %s158
          %s160 = smul.addr %s159, 64
          %s161 = scalar_lea.hbm %s1, %s160
          %s162 = sshll.u32 %s152, 4
          %s163 = int_to_ptr.vmem [resolvable:$true] %s162
          %168 = dma.hbm_to_vmem [thread:$0]  %s161, 4096, %s163, %s149, 128, 128, 8
        $region24: #{tpu_custom_call.1} parent=15 // pred_fallthru
          _
      $region16: #{tpu_custom_call.1} parent=5 // pred_fallthru
        _
      %p169 = scmp.le.s32.totalorder 1, %s15
      %p170 = scmp.lt.s32.totalorder %s15, 5
      %p171 = pnand %p169, %p170
      %p172 = pneg %p171
      // Predicated region
      $region25: #{tpu_custom_call.1} parent=5 // pred_check
        _
      $region26: #{tpu_custom_call.1} parent=5 // pred_check_branch
        %174 = sbr.rel (%p171) target = $region28
      $region27: #{tpu_custom_call.1} parent=5 // pred_region
        %s175 = ssub.s32 %s15, 1
        %s176 = sand.u32 %s40, 1
        %s177 = scalar_lea.sflag [#allocation3], %s176
        %s178 = sand.u32 %s40, 1
        %s179 = smul.addr %s178, 2
        %s180 = scalar_lea.vmem [#allocation2], %s179
        // Predicated region
        $region29: #{tpu_custom_call.1} parent=27 // pred_check
          %p181 = pneg %p53
        $region30: #{tpu_custom_call.1} parent=27 // pred_check_branch
          %183 = sbr.rel (%p181) target = $region32
        $region31: #{tpu_custom_call.1} parent=27 // pred_region
          %184 = dma.done %s177, 32
        $region32: #{tpu_custom_call.1} parent=27 // pred_fallthru
          _
        %s185 = sand.u32 %s68, 1
        %s186 = scalar_lea.sflag [#allocation6], %s185
        %s187 = sand.u32 %s68, 1
        %s188 = smul.addr %s187, 256
        %s189 = scalar_lea.vmem [#allocation5], %s188
        // Predicated region
        $region33: #{tpu_custom_call.1} parent=27 // pred_check
          %p190 = pneg %p81
        $region34: #{tpu_custom_call.1} parent=27 // pred_check_branch
          %192 = sbr.rel (%p190) target = $region36
        $region35: #{tpu_custom_call.1} parent=27 // pred_region
          %193 = dma.done %s186, 4096
        $region36: #{tpu_custom_call.1} parent=27 // pred_fallthru
          _
        %s194 = sand.u32 %s40, 1
        %s195 = scalar_lea.sflag [#allocation3], %s194
        %s196 = sand.u32 %s40, 1
        %s197 = smul.addr %s196, 2
        %s198 = scalar_lea.vmem [#allocation2], %s197
        %p199 = pneg %p53
        %p200 = pneg %p50
        %s201 = sand.u32 %s68, 1
        %s202 = scalar_lea.sflag [#allocation6], %s201
        %s203 = sand.u32 %s68, 1
        %s204 = smul.addr %s203, 256
        %s205 = scalar_lea.vmem [#allocation5], %s204
        %p206 = pneg %p81
        %p207 = pneg %p78
        %p208 = pneg %p107
        %p209 = pneg %p104
        %s210 = smul.u32 2, %s25
        %s211 = smul.u32 32, %s25
        %s212 = smul.u32 2, %s24
        %s213 = smul.u32 2, %s24
        %p214 = scmp.eq.s32.totalorder %s25, 0
        // Predicated region
        $region37: #{tpu_custom_call.1} parent=27 // pred_check
          %p215 = pneg %p214
        $region38: #{tpu_custom_call.1} parent=27 // pred_check_branch
          %217 = sbr.rel (%p215) target = $region40
        $region39: #{tpu_custom_call.1} parent=27 // pred_region
          %218 = vst [vmem:[#allocation7] sm:$0xf] 0.0
        $region40: #{tpu_custom_call.1} parent=27 // pred_fallthru
          _
        %v219 = vld [vmem:[#allocation7] sm:$0xf]
        %v220 = vld [vmem:[%s180] sm:$0x3]
        %v221 = vld [vmem:[%s189] sm:$0xff]
        %v222 = vld [vmem:[%s189 + $0x8] sm:$0xff]
        %v223 = vld [vmem:[%s189 + $0x10] sm:$0xff]
        %v224 = vld [vmem:[%s189 + $0x18] sm:$0xff]
        %v225 = vld [vmem:[%s189 + $0x20] sm:$0xff]
        %v226 = vld [vmem:[%s189 + $0x28] sm:$0xff]
        %v227 = vld [vmem:[%s189 + $0x30] sm:$0xff]
        %v228 = vld [vmem:[%s189 + $0x38] sm:$0xff]
        %v229 = vld [vmem:[%s189 + $0x40] sm:$0xff]
        %v230 = vld [vmem:[%s189 + $0x48] sm:$0xff]
        %v231 = vld [vmem:[%s189 + $0x50] sm:$0xff]
        %v232 = vld [vmem:[%s189 + $0x58] sm:$0xff]
        %v233 = vld [vmem:[%s189 + $0x60] sm:$0xff]
        %v234 = vld [vmem:[%s189 + $0x68] sm:$0xff]
        %v235 = vld [vmem:[%s189 + $0x70] sm:$0xff]
        %v236 = vld [vmem:[%s189 + $0x78] sm:$0xff]
        %v237 = vld [vmem:[%s189 + $0x80] sm:$0xff]
        %v238 = vld [vmem:[%s189 + $0x88] sm:$0xff]
        %v239 = vld [vmem:[%s189 + $0x90] sm:$0xff]
        %v240 = vld [vmem:[%s189 + $0x98] sm:$0xff]
        %v241 = vld [vmem:[%s189 + $0xa0] sm:$0xff]
        %v242 = vld [vmem:[%s189 + $0xa8] sm:$0xff]
        %v243 = vld [vmem:[%s189 + $0xb0] sm:$0xff]
        %v244 = vld [vmem:[%s189 + $0xb8] sm:$0xff]
        %v245 = vld [vmem:[%s189 + $0xc0] sm:$0xff]
        %v246 = vld [vmem:[%s189 + $0xc8] sm:$0xff]
        %v247 = vld [vmem:[%s189 + $0xd0] sm:$0xff]
        %v248 = vld [vmem:[%s189 + $0xd8] sm:$0xff]
        %v249 = vld [vmem:[%s189 + $0xe0] sm:$0xff]
        %v250 = vld [vmem:[%s189 + $0xe8] sm:$0xff]
        %v251 = vld [vmem:[%s189 + $0xf0] sm:$0xff]
        %v252 = vld [vmem:[%s189 + $0xf8] sm:$0xff]
        %v255 = vunpack.c.l.s4 1966171168
        %v256 = vunpack.c.0.s8 %v255
        %v257 = vlaneseq
        %v258 = vshrl.u32 %v257, 7
        %v259 = vsub.s32 %v256, %v258
        %v260 = vrot.slane %v220, %v259
        %v261 = vcombine.high %v260, %v260
        %v263 = vunpack.c.l.s4 1966171168
        %v264 = vunpack.c.0.s8 %v263
        %v265 = vlaneseq
        %v266 = vshrl.u32 %v265, 7
        %v267 = vsub.s32 %v264, %v266
        %v268 = vrot.slane %v260, %v267
        %v270 = vunpack.c.l.s4 1966171168
        %v271 = vunpack.c.0.s8 %v270
        %v272 = vlaneseq
        %v273 = vshrl.u32 %v272, 7
        %v274 = vsub.s32 %v271, %v273
        %v275 = vrot.slane %v261, %v274
        %v310 = vunpack.c.l.b16 %v221
        %v311 = vunpack.c.h.b16 %v221
        %v312 = vunpack.c.l.b16 %v222
        %v313 = vunpack.c.h.b16 %v222
        %v314 = vunpack.c.l.b16 %v223
        %v315 = vunpack.c.h.b16 %v223
        %v316 = vunpack.c.l.b16 %v224
        %v317 = vunpack.c.h.b16 %v224
        %v318 = vunpack.c.l.b16 %v225
        %v319 = vunpack.c.h.b16 %v225
        %v320 = vunpack.c.l.b16 %v226
        %v321 = vunpack.c.h.b16 %v226
        %v322 = vunpack.c.l.b16 %v227
        %v323 = vunpack.c.h.b16 %v227
        %v324 = vunpack.c.l.b16 %v228
        %v325 = vunpack.c.h.b16 %v228
        %v326 = vunpack.c.l.b16 %v229
        %v327 = vunpack.c.h.b16 %v229
        %v328 = vunpack.c.l.b16 %v230
        %v329 = vunpack.c.h.b16 %v230
        %v330 = vunpack.c.l.b16 %v231
        %v331 = vunpack.c.h.b16 %v231
        %v332 = vunpack.c.l.b16 %v232
        %v333 = vunpack.c.h.b16 %v232
        %v334 = vunpack.c.l.b16 %v233
        %v335 = vunpack.c.h.b16 %v233
        %v336 = vunpack.c.l.b16 %v234
        %v337 = vunpack.c.h.b16 %v234
        %v338 = vunpack.c.l.b16 %v235
        %v339 = vunpack.c.h.b16 %v235
        %v340 = vunpack.c.l.b16 %v236
        %v341 = vunpack.c.h.b16 %v236
        %v342 = vunpack.c.l.b16 %v237
        %v343 = vunpack.c.h.b16 %v237
        %v344 = vunpack.c.l.b16 %v238
        %v345 = vunpack.c.h.b16 %v238
        %v346 = vunpack.c.l.b16 %v239
        %v347 = vunpack.c.h.b16 %v239
        %v348 = vunpack.c.l.b16 %v240
        %v349 = vunpack.c.h.b16 %v240
        %v350 = vunpack.c.l.b16 %v241
        %v351 = vunpack.c.h.b16 %v241
        %v352 = vunpack.c.l.b16 %v242
        %v353 = vunpack.c.h.b16 %v242
        %v354 = vunpack.c.l.b16 %v243
        %v355 = vunpack.c.h.b16 %v243
        %v356 = vunpack.c.l.b16 %v244
        %v357 = vunpack.c.h.b16 %v244
        %v358 = vunpack.c.l.b16 %v245
        %v359 = vunpack.c.h.b16 %v245
        %v360 = vunpack.c.l.b16 %v246
        %v361 = vunpack.c.h.b16 %v246
        %v362 = vunpack.c.l.b16 %v247
        %v363 = vunpack.c.h.b16 %v247
        %v364 = vunpack.c.l.b16 %v248
        %v365 = vunpack.c.h.b16 %v248
        %v366 = vunpack.c.l.b16 %v249
        %v367 = vunpack.c.h.b16 %v249
        %v368 = vunpack.c.l.b16 %v250
        %v369 = vunpack.c.h.b16 %v250
        %v370 = vunpack.c.l.b16 %v251
        %v371 = vunpack.c.h.b16 %v251
        %v372 = vunpack.c.l.b16 %v252
        %v373 = vunpack.c.h.b16 %v252
        %v374 = vpack.c.b16 %v312, %v310
        %v375 = vpack.c.b16 %v313, %v311
        %v376 = vpack.c.b16 %v316, %v314
        %v377 = vpack.c.b16 %v317, %v315
        %v378 = vpack.c.b16 %v320, %v318
        %v379 = vpack.c.b16 %v321, %v319
        %v380 = vpack.c.b16 %v324, %v322
        %v381 = vpack.c.b16 %v325, %v323
        %v382 = vpack.c.b16 %v328, %v326
        %v383 = vpack.c.b16 %v329, %v327
        %v384 = vpack.c.b16 %v332, %v330
        %v385 = vpack.c.b16 %v333, %v331
        %v386 = vpack.c.b16 %v336, %v334
        %v387 = vpack.c.b16 %v337, %v335
        %v388 = vpack.c.b16 %v340, %v338
        %v389 = vpack.c.b16 %v341, %v339
        %v390 = vpack.c.b16 %v344, %v342
        %v391 = vpack.c.b16 %v345, %v343
        %v392 = vpack.c.b16 %v348, %v346
        %v393 = vpack.c.b16 %v349, %v347
        %v394 = vpack.c.b16 %v352, %v350
        %v395 = vpack.c.b16 %v353, %v351
        %v396 = vpack.c.b16 %v356, %v354
        %v397 = vpack.c.b16 %v357, %v355
        %v398 = vpack.c.b16 %v360, %v358
        %v399 = vpack.c.b16 %v361, %v359
        %v400 = vpack.c.b16 %v364, %v362
        %v401 = vpack.c.b16 %v365, %v363
        %v402 = vpack.c.b16 %v368, %v366
        %v403 = vpack.c.b16 %v369, %v367
        %v404 = vpack.c.b16 %v372, %v370
        %v405 = vpack.c.b16 %v373, %v371
        %438 = vmatprep.subr.bf16.mxu0 %v375
        %439 = vmatpush1.bf16.msra.mxu0 %v374
        %440 = vmatprep.subr.bf16.mxu0 %v377
        %441 = vmatpush1.bf16.msra.mxu0 %v376
        %442 = vmatprep.subr.bf16.mxu0 %v379
        %443 = vmatpush1.bf16.msra.mxu0 %v378
        %444 = vmatprep.subr.bf16.mxu0 %v381
        %445 = vmatpush1.bf16.msra.mxu0 %v380
        %446 = vmatprep.subr.bf16.mxu0 %v383
        %447 = vmatpush1.bf16.msra.mxu0 %v382
        %448 = vmatprep.subr.bf16.mxu0 %v385
        %449 = vmatpush1.bf16.msra.mxu0 %v384
        %450 = vmatprep.subr.bf16.mxu0 %v387
        %451 = vmatpush1.bf16.msra.mxu0 %v386
        %452 = vmatprep.subr.bf16.mxu0 %v389
        %453 = vmatpush1.bf16.msra.mxu0 %v388
        %454 = vmatprep.subr.bf16.mxu0 %v391
        %455 = vmatpush1.bf16.msra.mxu0 %v390
        %456 = vmatprep.subr.bf16.mxu0 %v393
        %457 = vmatpush1.bf16.msra.mxu0 %v392
        %458 = vmatprep.subr.bf16.mxu0 %v395
        %459 = vmatpush1.bf16.msra.mxu0 %v394
        %460 = vmatprep.subr.bf16.mxu0 %v397
        %461 = vmatpush1.bf16.msra.mxu0 %v396
        %462 = vmatprep.subr.bf16.mxu0 %v399
        %463 = vmatpush1.bf16.msra.mxu0 %v398
        %464 = vmatprep.subr.bf16.mxu0 %v401
        %465 = vmatpush1.bf16.msra.mxu0 %v400
        %466 = vmatprep.subr.bf16.mxu0 %v403
        %467 = vmatpush1.bf16.msra.mxu0 %v402
        %468 = vmatprep.subr.bf16.mxu0 %v405
        %469 = vmatpush1.bf16.msra.mxu0 %v404
        %470 = vmatprep.mubr.bf16.mxu0 %v275
        %471 = vmatmul.mubr.bf16.gmra.mrb[0].mxu0 %v268
        %v472 = vpop.f32.mrb[0].mxu0
        %v473 = vadd.f32 0.0, %v472
        %v474 = vpop.f32.mrb[0].mxu0
        %v475 = vadd.f32 0.0, %v474
        %v476 = vpop.f32.mrb[0].mxu0
        %v477 = vpop.f32.mrb[0].mxu0
        %478 = vdwg.mxu0
        %v481 = vcombine.low %v473, %v475
        %v483 = vunpack.c.l.s4 1983009808
        %v484 = vunpack.c.0.s8 %v483
        %v485 = vlaneseq
        %v486 = vshrl.u32 %v485, 7
        %v487 = vsub.s32 %v484, %v486
        %v488 = vrot.slane %v481, %v487
        %v490 = vadd.f32 %v219, %v488
        %491 = vst [vmem:[#allocation7] sm:$0xf] %v490
        // Predicated region
        $region41: #{tpu_custom_call.1} parent=27 // pred_check
          %p492 = pneg %p104
        $region42: #{tpu_custom_call.1} parent=27 // pred_check_branch
          %494 = sbr.rel (%p492) target = $region44
        $region43: #{tpu_custom_call.1} parent=27 // pred_region
          %s495 = smul.u32 2, %s24
          %s497 = ssub.s32 64, 64
          %498 = vsyncadd [#allocation4], %s497
          %s499 = smul.addr %s495, 32
          %s500 = scalar_lea.hbm %s2, %s499
          %s502 = sshll.u32 [#allocation7], 4
          %s503 = int_to_ptr.vmem [resolvable:$true] %s502
          %505 = dma.vmem_to_hbm [thread:$0]  %s503, 64, %s500, [#allocation4]
        $region44: #{tpu_custom_call.1} parent=27 // pred_fallthru
          _
        // Predicated region
        $region45: #{tpu_custom_call.1} parent=27 // pred_check
          %p506 = pneg %p104
        $region46: #{tpu_custom_call.1} parent=27 // pred_check_branch
          %508 = sbr.rel (%p506) target = $region48
        $region47: #{tpu_custom_call.1} parent=27 // pred_region
          %509 = dma.done [#allocation4], 64
        $region48: #{tpu_custom_call.1} parent=27 // pred_fallthru
          _
      $region28: #{tpu_custom_call.1} parent=5 // pred_fallthru
        _
      %p510 = scmp.le.s32.totalorder 2, %s15
      // Predicated region
      $region49: #{tpu_custom_call.1} parent=5 // pred_check
        %p511 = pneg %p510
      $region50: #{tpu_custom_call.1} parent=5 // pred_check_branch
        %513 = sbr.rel (%p511) target = $region52
      $region51: #{tpu_custom_call.1} parent=5 // pred_region
        %s514 = ssub.s32 %s15, 2
      $region52: #{tpu_custom_call.1} parent=5 // pred_fallthru
        _
    $region6: #{tpu_custom_call.1} parent=1 // loop_footer
      %s19 = sadd.s32 1, %s15
    $region7: #{tpu_custom_call.1} parent=1 // loop_footer_branch
      %14 = sbr.rel target = $region3
    $region8: #{tpu_custom_call.1} parent=1 // loop_exit
      _
    %515 = vsyncpa [#allocation3], 1
    %s516 = scalar_lea.sflag [#allocation3], 1
    %517 = vsyncpa %s516, 1
    %518 = vsyncpa [#allocation6], 1
    %s519 = scalar_lea.sflag [#allocation6], 1
    %520 = vsyncpa %s519, 1
    %521 = vsyncpa [#allocation4], 1
    %s522 = scalar_lea.sflag [#allocation4], 1
    %523 = vsyncpa %s522, 1

</llo_original>
